<compile_context>
chip_gen: v7x
topology: tpu7x:2x2x1
jax: 0.10.0
libtpu: 0.0.40
codegen_flags: <defaults>
</compile_context>

<pallas_src>
import functools

import jax
import jax.numpy as jnp
from jax.experimental import pallas as pl
from jax.experimental.pallas import tpu as pltpu

_MIB = 1 << 20


def _ripool_kernel(x_ref, o_ref, *, n_ori):
    x = x_ref[...]                                  # (Bn, Cblk, T): channels on sublanes
    bn, cblk, t = x.shape
    g = cblk // n_ori
    # Orientation is channel-fastest, so this reshape splits the sublane dim exactly at
    # native 8-sublane tile boundaries for n_ori == 8 with 32-bit dtypes (pure view).
    x4 = x.reshape(bn, g, n_ori, t)
    o_ref[...] = jnp.max(x4, axis=2).astype(o_ref.dtype)


def _vmem_budget():
    """(input-block budget, explicit scoped-VMEM limit), generation-aware."""
    phys = 64 * _MIB                                # conservative default (v7x per-TC physical)
    try:
        phys = int(pltpu.get_tpu_info().vmem_capacity_bytes)
    except Exception:
        pass
    if phys <= 64 * _MIB:
        # v7x-class: 64 MiB physical / 32 MiB scoped default per TC.
        # 2.25x double-buffered footprint of an 8 MiB input block ~= 18 MiB <= 28 MiB.
        return 8 * _MIB, 28 * _MIB
    # v5e / v6e: 128 MiB physical; override the 16/32 MiB scoped defaults explicitly.
    return 12 * _MIB, 40 * _MIB


def _plan_tiles(n, c, g, hw, n_ori, itemsize, budget):
    """Pick block dims (Bn, Gblk, T); input block is (Bn, Gblk*n_ori, T)."""
    slab = c * hw * itemsize                        # one batch element's full input slab
    if slab <= budget:
        # Case A/B: full (C, HW) per element; batch-block to amortize per-step overhead.
        bn = min(n, max(1, budget // slab))
        if n >= 2:
            bn = min(bn, n // 2)                    # keep >= 2 parallel grid steps
        while n % bn:                               # exact divisor -> no ragged batch blocks
            bn -= 1
        return bn, g, hw

    if g <= 8:
        # Cannot carve an 8-aligned group sub-block; keep all channels, split HW.
        t = min(hw, max(128, (budget // (c * itemsize)) // 128 * 128))
        return 1, g, t

    group_slab = n_ori * hw * itemsize              # one orientation group at full HW
    gblk = (budget // group_slab) // 8 * 8          # 8-group aligned, full-HW contiguous rows
    if gblk >= 8:
        return 1, gblk, hw                          # gblk < g is guaranteed here

    # Even 8 full-HW groups exceed the budget: fix an 8-group channel block, split HW.
    cblk = 8 * n_ori
    t = min(hw, max(128, (budget // (cblk * itemsize)) // 128 * 128))
    return 1, 8, t


def rotation_invariant_pooling(x, n_orientation=8):
    """x: (N, C, H, W) with C % n_orientation == 0.  Returns (N, C // n_orientation, H, W)."""
    n, c, h, w = x.shape
    assert c % n_orientation == 0, "channels must be a multiple of nOrientation"
    g = c // n_orientation
    hw = h * w
    itemsize = jnp.dtype(x.dtype).itemsize

    budget, vmem_limit = _vmem_budget()
    bn, gblk, t = _plan_tiles(n, c, g, hw, n_orientation, itemsize, budget)
    cblk = gblk * n_orientation

    x2 = x.reshape(n, c, hw)                        # free contiguous reshape, lane-dense last dim

    grid = (n // bn, pl.cdiv(g, gblk), pl.cdiv(hw, t))

    out = pl.pallas_call(
        functools.partial(_ripool_kernel, n_ori=n_orientation),
        out_shape=jax.ShapeDtypeStruct((n, g, hw), x.dtype),
        grid=grid,
        in_specs=[pl.BlockSpec((bn, cblk, t), lambda b, gc, s: (b, gc, s))],
        out_specs=pl.BlockSpec((bn, gblk, t), lambda b, gc, s: (b, gc, s)),
        compiler_params=pltpu.CompilerParams(
            dimension_semantics=("parallel", "parallel", "parallel"),
            vmem_limit_bytes=vmem_limit),
    )(x2)
    return out.reshape(n, g, h, w)


if __name__ == "__main__":
    key = jax.random.PRNGKey(0)
    N, G, N_ORI, H, W = 2, 4, 8, 16, 16             # C = 32 channels (4 groups x 8 orientations)
    C = G * N_ORI
    x = jax.random.normal(key, (N, C, H, W), jnp.float32)

    out = jax.jit(rotation_invariant_pooling)(x)
    jax.block_until_ready(out)

    # Pure-JAX reference (same math as the PyTorch module's view + max(dim=2)).
    ref = jnp.max(x.reshape(N, G, N_ORI, H, W), axis=2)
    assert out.shape == (N, G, H, W)
    assert jnp.allclose(out, ref), "mismatch vs reference"
    print("KERNEL_OK")
</pallas_src>

<mosaic_0001>
module attributes {stable_mosaic.version = 11 : i64} {
  func.func @_ripool_kernel(%arg0: i32, %arg1: i32, %arg2: i32, %arg3: memref<1x32x256xf32, #tpu.memory_space<vmem>>, %arg4: memref<1x4x256xf32, #tpu.memory_space<vmem>>) attributes {dimension_semantics = [#tpu.dimension_semantics<parallel>, #tpu.dimension_semantics<parallel>, #tpu.dimension_semantics<parallel>], iteration_bounds = array<i64: 2, 1, 1>, scalar_prefetch = 0 : i64, scratch_operands = 0 : i64, tpu.core_type = #tpu.core_type<tc>, window_params = [{transform_indices = @transform_0, window_bounds = array<i64: 1, 32, 256>}, {transform_indices = @transform_1, window_bounds = array<i64: 1, 4, 256>}]} {
    %c0 = arith.constant 0 : index
    %c0_0 = arith.constant 0 : index
    %c0_1 = arith.constant 0 : index
    %0 = vector.load %arg3[%c0, %c0_0, %c0_1] : memref<1x32x256xf32, #tpu.memory_space<vmem>>, vector<1x32x256xf32>
    %1 = vector.shape_cast %0 : vector<1x32x256xf32> to vector<1x4x8x256xf32>
    %cst = arith.constant dense<0xFF800000> : vector<1x4x256xf32>
    %2 = vector.multi_reduction <maximumf>, %1, %cst [2] : vector<1x4x8x256xf32> to vector<1x4x256xf32>
    %c0_2 = arith.constant 0 : index
    %c0_3 = arith.constant 0 : index
    %c0_4 = arith.constant 0 : index
    %3 = vector.load %arg4[%c0_2, %c0_3, %c0_4] : memref<1x4x256xf32, #tpu.memory_space<vmem>>, vector<1x4x256xf32>
    tpu.vector_store %arg4[%c0_2, %c0_3, %c0_4], %2 {strides = array<i32>} : memref<1x4x256xf32, #tpu.memory_space<vmem>>, vector<1x4x256xf32>,
    return
  }
  func.func @transform_0(%arg0: i32, %arg1: i32, %arg2: i32) -> (i32, i32, i32) {
    %c0_i32 = arith.constant 0 : i32
    return %arg0, %arg1, %arg2 : i32, i32, i32
  }
  func.func @transform_1(%arg0: i32, %arg1: i32, %arg2: i32) -> (i32, i32, i32) {
    %c0_i32 = arith.constant 0 : i32
    return %arg0, %arg1, %arg2 : i32, i32, i32
  }
}

</mosaic_0001>

<llo_original>
// kernel: rotation_invariant_pooling.1
$region0: #{rotation_invariant_pooling.1}
  #allocation0 [shape = 'u32[]', space=smem, size = 0x4, offset = 0x4, fixed_abs, tag = 'smem constant byte address 0x4 - core index']
  #allocation1 [shape = 'u32[144,128]{1,0:T(1,128)}', space=vmem, size = 0x12000, scoped, tag = 'internal scratch']
  %s0 = inlined_call_operand.vmem [shape: f32[2,32,256], index: 0, kind: input, shape index: {}]
  %s1 = inlined_call_operand.vmem [shape: f32[2,4,256], index: 1, kind: output, shape index: {}]
  %s2 = sld [smem:[#allocation0]]
  $region37: #{rotation_invariant_pooling.1} parent=0
    _
  %s4 = ssub.s32 1, %s2
  %s5 = scalar_select 0, %s4, %s2
  loop: start=0, step=1, limit=4
  $region2: #{rotation_invariant_pooling.1} parent=0 // loop_pre_header
    _
  $region3: #{rotation_invariant_pooling.1} parent=0 // loop_header
    %s7 = sphi 0, %s11
    %p8 = scmp.ge.s32.totalorder %s7, 4
    %s14 = sphi 0, %s33
    %s15 = sphi 0, %s29
    %s16 = sphi 0, %s25
    %s17 = sphi 0, %s14
    %s18 = sphi 0, %s15
    %s19 = sphi 0, %s16
    %s20 = sphi 0, %s17
    %s21 = sphi 0, %s18
    %s22 = sphi 0, %s19
    %s40 = sphi 0, %s42
    %s43 = sphi 0, %s40
    %s44 = sphi 0, %s43
    %s60 = sphi 0, %s44
    %s70 = sphi 0, %s72
    %s73 = sphi 0, %s70
    %s74 = sphi 0, %s73
    %s90 = sphi 0, %s74
  $region4: #{rotation_invariant_pooling.1} parent=0 // loop_header_branch
    %10 = sbr.rel (%p8) target = $region8
  $region5: #{rotation_invariant_pooling.1} parent=0 // loop_body
    %s12 = ssub.s32 %s7, 1
    %s13 = ssub.s32 %s7, 2
    %s23 = sadd.s32 1, %s16
    %p24 = scmp.ge.s32.totalorder %s23, 1
    %s25 = scalar_select %p24, 0, %s23
    %s26 = sadd.s32 1, %s15
    %s27 = scalar_select %p24, %s26, %s15
    %p28 = scmp.ge.s32.totalorder %s27, 1
    %s29 = scalar_select %p28, 0, %s27
    %s30 = sadd.s32 1, %s14
    %s31 = scalar_select %p28, %s30, %s14
    %p32 = scmp.ge.s32.totalorder %s31, 2
    %s33 = scalar_select %p32, 0, %s31
    %s34 = ssub.s32 %s14, %s33
    %s35 = ssub.s32 %s15, %s29
    %s36 = sor.u32 %s34, %s35
    %s37 = ssub.s32 %s16, %s25
    %s38 = sor.u32 %s36, %s37
    %p39 = scmp.eq.s32.totalorder %s38, 0
    %s41 = sadd.s32 %s40, 1
    %s42 = scalar_select %p39, %s40, %s41
    %p45 = pneg %p39
    %p46 = scmp.eq.s32.totalorder %s7, 1
    %p47 = por %p45, %p46
    %p48 = scmp.ne.s32.totalorder %s40, %s43
    %p49 = scmp.eq.s32.totalorder %s7, 0
    %p50 = por %p48, %p49
    %p51 = scmp.ne.s32.totalorder %s40, %s43
    %p52 = scmp.eq.s32.totalorder %s12, 1
    %p53 = por %p51, %p52
    %p54 = scmp.ne.s32.totalorder %s43, %s44
    %p55 = scmp.eq.s32.totalorder %s12, 0
    %p56 = por %p54, %p55
    %p57 = scmp.ne.s32.totalorder %s43, %s44
    %p58 = scmp.eq.s32.totalorder %s13, 1
    %p59 = por %p57, %p58
    %p61 = scmp.ne.s32.totalorder %s44, %s60
    %p62 = scmp.eq.s32.totalorder %s13, 0
    %p63 = por %p61, %p62
    %s64 = ssub.s32 %s14, %s33
    %s65 = ssub.s32 %s15, %s29
    %s66 = sor.u32 %s64, %s65
    %s67 = ssub.s32 %s16, %s25
    %s68 = sor.u32 %s66, %s67
    %p69 = scmp.eq.s32.totalorder %s68, 0
    %s71 = sadd.s32 %s70, 1
    %s72 = scalar_select %p69, %s70, %s71
    %p75 = pneg %p69
    %p76 = scmp.eq.s32.totalorder %s7, 1
    %p77 = por %p75, %p76
    %p78 = scmp.ne.s32.totalorder %s70, %s73
    %p79 = scmp.eq.s32.totalorder %s7, 0
    %p80 = por %p78, %p79
    %p81 = scmp.ne.s32.totalorder %s70, %s73
    %p82 = scmp.eq.s32.totalorder %s12, 1
    %p83 = por %p81, %p82
    %p84 = scmp.ne.s32.totalorder %s73, %s74
    %p85 = scmp.eq.s32.totalorder %s12, 0
    %p86 = por %p84, %p85
    %p87 = scmp.ne.s32.totalorder %s73, %s74
    %p88 = scmp.eq.s32.totalorder %s13, 1
    %p89 = por %p87, %p88
    %p91 = scmp.ne.s32.totalorder %s74, %s90
    %p92 = scmp.eq.s32.totalorder %s13, 0
    %p93 = por %p91, %p92
    %p94 = scmp.le.s32.totalorder 1, %s7
    %p95 = scmp.lt.s32.totalorder %s7, 3
    %p96 = pnand %p94, %p95
    %p97 = pneg %p96
    // Predicated region
    $region9: #{rotation_invariant_pooling.1} parent=5 // pred_check
      _
    $region10: #{rotation_invariant_pooling.1} parent=5 // pred_check_branch
      %99 = sbr.rel (%p96) target = $region12
    $region11: #{rotation_invariant_pooling.1} parent=5 // pred_region
      %s100 = ssub.s32 %s7, 1
    $region12: #{rotation_invariant_pooling.1} parent=5 // pred_fallthru
      _
    %p101 = scmp.lt.s32.totalorder %s7, 2
    // Predicated region
    $region13: #{rotation_invariant_pooling.1} parent=5 // pred_check
      %p102 = pneg %p101
    $region14: #{rotation_invariant_pooling.1} parent=5 // pred_check_branch
      %104 = sbr.rel (%p102) target = $region16
    $region15: #{rotation_invariant_pooling.1} parent=5 // pred_region
      // Predicated region
      $region17: #{rotation_invariant_pooling.1} parent=15 // pred_check
        %p105 = pneg %p50
      $region18: #{rotation_invariant_pooling.1} parent=15 // pred_check_branch
        %107 = sbr.rel (%p105) target = $region20
      $region19: #{rotation_invariant_pooling.1} parent=15 // pred_region
        %s108 = smul.u32 4, %s15
        %s109 = smul.u32 2, %s16
        %p110 = scmp.lt.s32.totalorder %s14, 1
        %s111 = scalar_select %p110, %s14, 1
        %p112 = scmp.lt.s32.totalorder %s108, 3
        %s113 = scalar_select %p112, %s108, 3
        %p114 = scmp.lt.s32.totalorder %s109, 1
        %s115 = scalar_select %p114, %s109, 1
        %s116 = smul.addr %s113, 2
        %s117 = sadd.s32 %s115, %s116
        %s118 = smul.addr %s111, 8
        %s119 = sadd.s32 %s117, %s118
        %s120 = smul.addr %s119, 8
        %s121 = scalar_lea.vmem %s0, %s120
        %s122 = smul.u32 4, %s15
        %s123 = smul.u32 2, %s16
      $region20: #{rotation_invariant_pooling.1} parent=15 // pred_fallthru
        _
    $region16: #{rotation_invariant_pooling.1} parent=5 // pred_fallthru
      _
    %p124 = scmp.le.s32.totalorder 1, %s7
    %p125 = scmp.lt.s32.totalorder %s7, 3
    %p126 = pnand %p124, %p125
    %p127 = pneg %p126
    // Predicated region
    $region21: #{rotation_invariant_pooling.1} parent=5 // pred_check
      _
    $region22: #{rotation_invariant_pooling.1} parent=5 // pred_check_branch
      %129 = sbr.rel (%p126) target = $region24
    $region23: #{rotation_invariant_pooling.1} parent=5 // pred_region
      %s130 = ssub.s32 %s7, 1
      %s131 = smul.u32 4, %s18
      %s132 = smul.u32 2, %s19
      %p133 = scmp.lt.s32.totalorder %s17, 1
      %s134 = scalar_select %p133, %s17, 1
      %p135 = scmp.lt.s32.totalorder %s131, 3
      %s136 = scalar_select %p135, %s131, 3
      %p137 = scmp.lt.s32.totalorder %s132, 1
      %s138 = scalar_select %p137, %s132, 1
      %s139 = smul.addr %s136, 2
      %s140 = sadd.s32 %s138, %s139
      %s141 = smul.addr %s134, 8
      %s142 = sadd.s32 %s140, %s141
      %s143 = smul.addr %s142, 8
      %s144 = scalar_lea.vmem %s0, %s143
      %p145 = pneg %p56
      %p146 = pneg %p53
      %p147 = pneg %p86
      %p148 = pneg %p83
      %s149 = smul.u32 2, %s19
      %p150 = scmp.lt.s32.totalorder %s17, 1
      %s151 = scalar_select %p150, %s17, 1
      %p152 = scmp.lt.s32.totalorder %s18, 0
      %s153 = scalar_select %p152, %s18, 0
      %p154 = scmp.lt.s32.totalorder %s149, 1
      %s155 = scalar_select %p154, %s149, 1
      %s156 = smul.addr %s153, 2
      %s157 = sadd.s32 %s155, %s156
      %s158 = smul.addr %s151, 2
      %s159 = sadd.s32 %s157, %s158
      %s160 = smul.addr %s159, 4
      %s161 = scalar_lea.vmem %s1, %s160
      %s162 = smul.u32 4, %s18
      %s163 = smul.u32 2, %s19
      %p164 = scmp.lt.s32.totalorder %s17, 1
      %s165 = scalar_select %p164, %s17, 1
      %p166 = scmp.lt.s32.totalorder %s162, 3
      %s167 = scalar_select %p166, %s162, 3
      %p168 = scmp.lt.s32.totalorder %s163, 1
      %s169 = scalar_select %p168, %s163, 1
      %s170 = smul.addr %s167, 2
      %s171 = sadd.s32 %s169, %s170
      %s172 = smul.addr %s165, 8
      %s173 = sadd.s32 %s171, %s172
      %s174 = smul.addr %s173, 8
      %s175 = scalar_lea.vmem %s0, %s174
      %s176 = smul.u32 4, %s18
      %s177 = smul.u32 2, %s19
      %s178 = smul.u32 2, %s19
      %p179 = scmp.lt.s32.totalorder %s17, 1
      %s180 = scalar_select %p179, %s17, 1
      %p181 = scmp.lt.s32.totalorder %s18, 0
      %s182 = scalar_select %p181, %s18, 0
      %p183 = scmp.lt.s32.totalorder %s178, 1
      %s184 = scalar_select %p183, %s178, 1
      %s185 = smul.addr %s182, 2
      %s186 = sadd.s32 %s184, %s185
      %s187 = smul.addr %s180, 2
      %s188 = sadd.s32 %s186, %s187
      %s189 = smul.addr %s188, 4
      %s190 = scalar_lea.vmem %s1, %s189
      %s191 = smul.u32 2, %s19
      %v192 = vld [vmem:[%s175] sm:$0xff]
      %v193 = vld [vmem:[%s175 + $0x8] sm:$0xff]
      %v194 = vld [vmem:[%s175 + $0x10] sm:$0xff]
      %v195 = vld [vmem:[%s175 + $0x18] sm:$0xff]
      %v196 = vld [vmem:[%s175 + $0x20] sm:$0xff]
      %v197 = vld [vmem:[%s175 + $0x28] sm:$0xff]
      %v198 = vld [vmem:[%s175 + $0x30] sm:$0xff]
      %v199 = vld [vmem:[%s175 + $0x38] sm:$0xff]
      %v200 = vrot.slane %v192, 4
      %v201 = vmax.f32 %v192, %v200
      %v202 = vrot.slane %v201, 2
      %v203 = vmax.f32 %v201, %v202
      %v204 = vrot.slane %v203, 1
      %v205 = vmax.f32 %v203, %v204
      %v206 = vrot.slane %v193, 4
      %v207 = vmax.f32 %v193, %v206
      %v208 = vrot.slane %v207, 2
      %v209 = vmax.f32 %v207, %v208
      %v210 = vrot.slane %v209, 1
      %v211 = vmax.f32 %v209, %v210
      %v212 = vrot.slane %v194, 4
      %v213 = vmax.f32 %v194, %v212
      %v214 = vrot.slane %v213, 2
      %v215 = vmax.f32 %v213, %v214
      %v216 = vrot.slane %v215, 1
      %v217 = vmax.f32 %v215, %v216
      %v218 = vrot.slane %v195, 4
      %v219 = vmax.f32 %v195, %v218
      %v220 = vrot.slane %v219, 2
      %v221 = vmax.f32 %v219, %v220
      %v222 = vrot.slane %v221, 1
      %v223 = vmax.f32 %v221, %v222
      %v224 = vrot.slane %v196, 4
      %v225 = vmax.f32 %v196, %v224
      %v226 = vrot.slane %v225, 2
      %v227 = vmax.f32 %v225, %v226
      %v228 = vrot.slane %v227, 1
      %v229 = vmax.f32 %v227, %v228
      %v230 = vrot.slane %v197, 4
      %v231 = vmax.f32 %v197, %v230
      %v232 = vrot.slane %v231, 2
      %v233 = vmax.f32 %v231, %v232
      %v234 = vrot.slane %v233, 1
      %v235 = vmax.f32 %v233, %v234
      %v236 = vrot.slane %v198, 4
      %v237 = vmax.f32 %v198, %v236
      %v238 = vrot.slane %v237, 2
      %v239 = vmax.f32 %v237, %v238
      %v240 = vrot.slane %v239, 1
      %v241 = vmax.f32 %v239, %v240
      %v242 = vrot.slane %v199, 4
      %v243 = vmax.f32 %v199, %v242
      %v244 = vrot.slane %v243, 2
      %v245 = vmax.f32 %v243, %v244
      %v246 = vrot.slane %v245, 1
      %v247 = vmax.f32 %v245, %v246
      %v256 = vcombine.low %v205, %v211
      %v257 = vcombine.low %v217, %v223
      %v258 = vcombine.low %v229, %v235
      %v259 = vcombine.low %v241, %v247
      %v260 = vrot.slane %v257, 7
      %vm261 = vcmask 1041409
      %v262 = vsel %vm261, %v260, %v256
      %vm263 = vcmask 1045509
      %v264 = vsel %vm263, %v260, %v262
      %v265 = vrot.slane %v258, 6
      %vm266 = vcmask 1042434
      %v267 = vsel %vm266, %v265, %v264
      %vm268 = vcmask 1046534
      %v269 = vsel %vm268, %v265, %v267
      %v270 = vrot.slane %v259, 5
      %vm271 = vcmask 1043459
      %v272 = vsel %vm271, %v270, %v269
      %vm273 = vcmask 1047559
      %v274 = vsel %vm273, %v270, %v272
      %276 = vst [vmem:[%s190] sm:$0xff] %v274
      %s277 = smul.u32 2, %s19
      %p278 = scmp.lt.s32.totalorder %s17, 1
      %s279 = scalar_select %p278, %s17, 1
      %p280 = scmp.lt.s32.totalorder %s18, 0
      %s281 = scalar_select %p280, %s18, 0
      %p282 = scmp.lt.s32.totalorder %s277, 1
      %s283 = scalar_select %p282, %s277, 1
      %s284 = smul.addr %s281, 2
      %s285 = sadd.s32 %s283, %s284
      %s286 = smul.addr %s279, 2
      %s287 = sadd.s32 %s285, %s286
      %s288 = smul.addr %s287, 4
      %s289 = scalar_lea.vmem %s1, %s288
      // Predicated region
      $region25: #{rotation_invariant_pooling.1} parent=23 // pred_check
        %p290 = pneg %p83
      $region26: #{rotation_invariant_pooling.1} parent=23 // pred_check_branch
        %292 = sbr.rel (%p290) target = $region28
      $region27: #{rotation_invariant_pooling.1} parent=23 // pred_region
        %s293 = smul.u32 2, %s19
      $region28: #{rotation_invariant_pooling.1} parent=23 // pred_fallthru
        _
    $region24: #{rotation_invariant_pooling.1} parent=5 // pred_fallthru
      _
    %p294 = scmp.le.s32.totalorder 2, %s7
    // Predicated region
    $region29: #{rotation_invariant_pooling.1} parent=5 // pred_check
      %p295 = pneg %p294
    $region30: #{rotation_invariant_pooling.1} parent=5 // pred_check_branch
      %297 = sbr.rel (%p295) target = $region32
    $region31: #{rotation_invariant_pooling.1} parent=5 // pred_region
      %s298 = ssub.s32 %s7, 2
      // Predicated region
      $region33: #{rotation_invariant_pooling.1} parent=31 // pred_check
        %p299 = pneg %p89
      $region34: #{rotation_invariant_pooling.1} parent=31 // pred_check_branch
        %301 = sbr.rel (%p299) target = $region36
      $region35: #{rotation_invariant_pooling.1} parent=31 // pred_region
        %s302 = smul.u32 2, %s22
        %p303 = scmp.lt.s32.totalorder %s20, 1
        %s304 = scalar_select %p303, %s20, 1
        %p305 = scmp.lt.s32.totalorder %s21, 0
        %s306 = scalar_select %p305, %s21, 0
        %p307 = scmp.lt.s32.totalorder %s302, 1
        %s308 = scalar_select %p307, %s302, 1
        %s309 = smul.addr %s306, 2
        %s310 = sadd.s32 %s308, %s309
        %s311 = smul.addr %s304, 2
        %s312 = sadd.s32 %s310, %s311
        %s313 = smul.addr %s312, 4
        %s314 = scalar_lea.vmem %s1, %s313
      $region36: #{rotation_invariant_pooling.1} parent=31 // pred_fallthru
        _
    $region32: #{rotation_invariant_pooling.1} parent=5 // pred_fallthru
      _
  $region6: #{rotation_invariant_pooling.1} parent=0 // loop_footer
    %s11 = sadd.s32 1, %s7
  $region7: #{rotation_invariant_pooling.1} parent=0 // loop_footer_branch
    %6 = sbr.rel target = $region3
  $region8: #{rotation_invariant_pooling.1} parent=0 // loop_exit
    _

</llo_original>
